<compile_context>
chip_gen: v5e
topology: v5e:2x2
jax: 0.10.0
libtpu: 0.0.40
codegen_flags: <defaults>
</compile_context>

<pallas_src>
import jax
import jax.numpy as jnp
from jax.experimental import pallas as pl
from jax.experimental.pallas import tpu as pltpu


def _axial_pe_kernel(x_ref, pe_ref, o_ref):
    # x_ref : (bb, L)   streaming activation tile
    # pe_ref: (1,  L)   pre-folded positional-embedding tile (batch-resident)
    # One VPU add, lane-dense store.
    o_ref[...] = (x_ref[...] + pe_ref[...]).astype(o_ref.dtype)


def _round_down(x, m):
    return (x // m) * m


def _pick_tiles(B, N, itemsize, target_bytes):
    """Pick (bb, L) block dims for the flattened (B, N) view.

    bb: multiple of 8 (sublane pack) or the full batch dim.
    L : multiple of 128 (lane pack) or the full flattened feature dim.
    bb * L * itemsize <= target_bytes, so no shape can produce an over-VMEM
    block; pl.cdiv grids mask any ragged tail blocks.
    """
    LANE, SUB = 128, 8
    target_elems = max(SUB * LANE, target_bytes // itemsize)

    # Batch (sublane) chunk.
    if B <= SUB:
        bb = B                                   # full dim -> always legal
    else:
        bb_budget = max(SUB, target_elems // max(N, LANE))
        bb = max(SUB, min(_round_down(bb_budget, SUB), _round_down(B, SUB)))

    # Lane chunk: whatever budget is left after the batch rows.
    if bb * N <= target_elems:
        L = N                                    # full dim -> always legal
    else:
        L = max(LANE, _round_down(target_elems // bb, LANE))
        L = min(L, N)
    return bb, L


def axial_positional_embedding(x, pe_h, pe_w, *, target_bytes=4 << 20):
    """x: (B, C, H, W); pe_h: (C, H); pe_w: (C, W). Returns x + pe broadcasts."""
    B, C, H, W = x.shape
    assert pe_h.shape == (C, H) and pe_w.shape == (C, W)
    N = C * H * W
    itemsize = x.dtype.itemsize

    # Free layout plumbing for contiguous NCHW: flatten to (B, C*H*W).
    x2 = x.reshape(B, N)
    # Fold the two axial embeddings once, outside the hot loop, and cast to the
    # activation dtype.  (For B == 1 this materialization is a sizeable share
    # of total HBM traffic; a plain XLA broadcast-add is competitive there.)
    pe_sum = (pe_h[:, :, None] + pe_w[:, None, :]).reshape(1, N).astype(x.dtype)

    bb, L = _pick_tiles(B, N, itemsize, target_bytes)

    # If everything would land in one big tile, split it so both v7x
    # TensorCores get a share (no correctness effect; harmless on v5e/v6e).
    if pl.cdiv(B, bb) == 1 and pl.cdiv(N, L) == 1 and bb * L * itemsize > (1 << 20):
        if bb >= 16:
            bb = max(8, _round_down(pl.cdiv(bb, 2), 8))
        elif L >= 256:
            L = max(128, _round_down(pl.cdiv(L, 2), 128))

    # Lane chunks on the OUTER axis, batch chunks inner: pe's block index only
    # changes on the outer axis, so its DMA is skipped across inner steps.
    grid = (pl.cdiv(N, L), pl.cdiv(B, bb))

    out = pl.pallas_call(
        _axial_pe_kernel,
        out_shape=jax.ShapeDtypeStruct((B, N), x.dtype),
        grid_spec=pltpu.PrefetchScalarGridSpec(
            num_scalar_prefetch=0,
            grid=grid,
            in_specs=[
                pl.BlockSpec((bb, L), lambda j, b: (b, j)),
                pl.BlockSpec((1, L), lambda j, b: (0, j)),
            ],
            out_specs=pl.BlockSpec((bb, L), lambda j, b: (b, j)),
        ),
        compiler_params=pltpu.CompilerParams(
            dimension_semantics=("parallel", "parallel"),
            vmem_limit_bytes=48 * 1024 * 1024,
        ),
    )(x2, pe_sum)
    return out.reshape(B, C, H, W)


if __name__ == "__main__":
    # Small shapes consistent with the module: batch=2, channels=4, spatial=(16,16)
    B, C, H, W = 2, 4, 16, 16

    key = jax.random.PRNGKey(0)
    kx, kh, kw = jax.random.split(key, 3)

    x = jax.random.normal(kx, (B, C, H, W), dtype=jnp.float32)
    # Parameters (nn.init.normal_, std=1.0):
    #   pe[0] of shape (1, C, H, 1) -> stored compact as (C, H)
    #   pe[1] of shape (1, C, 1, W) -> stored compact as (C, W)
    pe_h = jax.random.normal(kh, (C, H), dtype=jnp.float32)
    pe_w = jax.random.normal(kw, (C, W), dtype=jnp.float32)

    out = axial_positional_embedding(x, pe_h, pe_w)
    out = jax.block_until_ready(out)

    # Pure-JAX reference check (broadcast add, identical to PyTorch forward).
    ref = x + pe_h[None, :, :, None] + pe_w[None, :, None, :]
    assert out.shape == (B, C, H, W)
    assert jnp.allclose(out, ref, atol=1e-6, rtol=1e-6)

    # Robustness check: awkward shapes + a tiny tile budget exercise the cdiv
    # grid with masked ragged tails on both the batch and lane axes.
    B2, C2, H2, W2 = 10, 5, 7, 9
    kx2, kh2, kw2 = jax.random.split(jax.random.PRNGKey(1), 3)
    x_r = jax.random.normal(kx2, (B2, C2, H2, W2), dtype=jnp.float32)
    pe_h_r = jax.random.normal(kh2, (C2, H2), dtype=jnp.float32)
    pe_w_r = jax.random.normal(kw2, (C2, W2), dtype=jnp.float32)
    out_r = jax.block_until_ready(
        axial_positional_embedding(x_r, pe_h_r, pe_w_r, target_bytes=4096))
    ref_r = x_r + pe_h_r[None, :, :, None] + pe_w_r[None, :, None, :]
    assert jnp.allclose(out_r, ref_r, atol=1e-6, rtol=1e-6)

    print("KERNEL_OK")
</pallas_src>

<mosaic_0001>
module attributes {stable_mosaic.version = 11 : i64} {
  func.func @_axial_pe_kernel(%arg0: i32, %arg1: i32, %arg2: memref<2x1024xf32, #tpu.memory_space<vmem>>, %arg3: memref<1x1024xf32, #tpu.memory_space<vmem>>, %arg4: memref<2x1024xf32, #tpu.memory_space<vmem>>) attributes {dimension_semantics = [#tpu.dimension_semantics<parallel>, #tpu.dimension_semantics<parallel>], iteration_bounds = array<i64: 1, 1>, scalar_prefetch = 0 : i64, scratch_operands = 0 : i64, tpu.core_type = #tpu.core_type<tc>, window_params = [{transform_indices = @transform_0, window_bounds = array<i64: 2, 1024>}, {transform_indices = @transform_1, window_bounds = array<i64: 1, 1024>}, {transform_indices = @transform_2, window_bounds = array<i64: 2, 1024>}]} {
    %c0 = arith.constant 0 : index
    %c0_0 = arith.constant 0 : index
    %0 = vector.load %arg2[%c0, %c0_0] : memref<2x1024xf32, #tpu.memory_space<vmem>>, vector<2x1024xf32>
    %c0_1 = arith.constant 0 : index
    %c0_2 = arith.constant 0 : index
    %1 = vector.load %arg3[%c0_1, %c0_2] : memref<1x1024xf32, #tpu.memory_space<vmem>>, vector<1x1024xf32>
    %2 = vector.broadcast %1 : vector<1x1024xf32> to vector<2x1024xf32>
    %3 = arith.addf %0, %2 : vector<2x1024xf32>
    %c0_3 = arith.constant 0 : index
    %c0_4 = arith.constant 0 : index
    %4 = vector.load %arg4[%c0_3, %c0_4] : memref<2x1024xf32, #tpu.memory_space<vmem>>, vector<2x1024xf32>
    tpu.vector_store %arg4[%c0_3, %c0_4], %3 {strides = array<i32>} : memref<2x1024xf32, #tpu.memory_space<vmem>>, vector<2x1024xf32>,
    return
  }
  func.func @transform_0(%arg0: i32, %arg1: i32) -> (i32, i32) {
    %c0_i32 = arith.constant 0 : i32
    return %arg1, %arg0 : i32, i32
  }
  func.func @transform_1(%arg0: i32, %arg1: i32) -> (i32, i32) {
    %c0_i32 = arith.constant 0 : i32
    %c0_i32_0 = arith.constant 0 : i32
    return %c0_i32, %arg0 : i32, i32
  }
  func.func @transform_2(%arg0: i32, %arg1: i32) -> (i32, i32) {
    %c0_i32 = arith.constant 0 : i32
    return %arg1, %arg0 : i32, i32
  }
}

</mosaic_0001>

<llo_original>
// kernel: tpu_custom_call.1
$region0: #{tpu_custom_call.1}
  #allocation0 [shape = 'u32[]', space=smem, size = 0x4, offset = 0x4, fixed_abs, tag = 'smem constant byte address 0x4 - core index']
  #allocation1 [shape = 'u32[72,128]{1,0:T(1,128)}', space=vmem, size = 0x9000, scoped, tag = 'internal scratch']
  %s0 = inlined_call_operand.hbm [shape: f32[2,1024], index: 0, kind: input, shape index: {}]
  %s1 = inlined_call_operand.hbm [shape: f32[1,1024], index: 1, kind: input, shape index: {}]
  %s2 = inlined_call_operand.hbm [shape: f32[2,1024], index: 2, kind: output, shape index: {}]
  %s3 = sld [smem:[#allocation0]]
  $region26: #{tpu_custom_call.1} parent=0
    _
  %s5 = ssub.s32 1, %s3
  %s6 = scalar_select 0, %s5, %s3
  $region1: #{tpu_custom_call.1} parent=0
    #allocation2 [shape = 'u8[8192]{0}', space=vmem, size = 0x2000, scoped, tag = 'input window, operand 0, single buffered']
    #allocation3 [shape = 's32[1]{0}', space=sflag, size = 0x4, scoped, tag = 'scoped memory for tpu_custom_call.1']
    #allocation4 [shape = 's32[1]{0}', space=sflag, size = 0x4, scoped, tag = 'scoped memory for tpu_custom_call.1']
    #allocation5 [shape = 'u8[4096]{0}', space=vmem, size = 0x1000, scoped, tag = 'input window, operand 1, single buffered']
    #allocation6 [shape = 's32[1]{0}', space=sflag, size = 0x4, scoped, tag = 'scoped memory for tpu_custom_call.1']
    #allocation7 [shape = 'u8[8192]{0}', space=vmem, size = 0x2000, scoped, tag = 'output window, operand 0, single buffered']
    %7 = vsyncpa [#allocation3], 0
    %8 = vsyncpa [#allocation6], 0
    %9 = vsyncpa [#allocation4], 0
    // Predicated region
    $region2: #{tpu_custom_call.1} parent=1 // pred_check
      _
    $region3: #{tpu_custom_call.1} parent=1 // pred_check_branch
      %11 = sbr.rel (0) target = $region5
    $region4: #{tpu_custom_call.1} parent=1 // pred_region
      %13 = vsyncadd [#allocation3], 0
      %s15 = sshll.u32 %s0, 4
      %s16 = int_to_ptr.hbm [resolvable:$true] %s15
      %s17 = sshll.u32 [#allocation2], 4
      %s18 = int_to_ptr.vmem [resolvable:$true] %s17
      %20 = dma.hbm_to_vmem [thread:$0]  %s16, 256, %s18, [#allocation3]
    $region5: #{tpu_custom_call.1} parent=1 // pred_fallthru
      _
    // Predicated region
    $region6: #{tpu_custom_call.1} parent=1 // pred_check
      _
    $region7: #{tpu_custom_call.1} parent=1 // pred_check_branch
      %22 = sbr.rel (0) target = $region9
    $region8: #{tpu_custom_call.1} parent=1 // pred_region
      %24 = vsyncadd [#allocation6], 0
      %s26 = sshll.u32 %s1, 4
      %s27 = int_to_ptr.hbm [resolvable:$true] %s26
      %s28 = sshll.u32 [#allocation5], 4
      %s29 = int_to_ptr.vmem [resolvable:$true] %s28
      %31 = dma.hbm_to_vmem [thread:$0]  %s27, 128, %s29, [#allocation6]
    $region9: #{tpu_custom_call.1} parent=1 // pred_fallthru
      _
    // Predicated region
    $region10: #{tpu_custom_call.1} parent=1 // pred_check
      _
    $region11: #{tpu_custom_call.1} parent=1 // pred_check_branch
      %33 = sbr.rel (0) target = $region13
    $region12: #{tpu_custom_call.1} parent=1 // pred_region
      %35 = dma.done [#allocation3], 256
    $region13: #{tpu_custom_call.1} parent=1 // pred_fallthru
      _
    // Predicated region
    $region14: #{tpu_custom_call.1} parent=1 // pred_check
      _
    $region15: #{tpu_custom_call.1} parent=1 // pred_check_branch
      %37 = sbr.rel (0) target = $region17
    $region16: #{tpu_custom_call.1} parent=1 // pred_region
      %39 = dma.done [#allocation6], 128
    $region17: #{tpu_custom_call.1} parent=1 // pred_fallthru
      _
    %v40 = vld [vmem:[#allocation2] sm:$0xff]
    %v41 = vld [vmem:[#allocation2 + $0x8] sm:$0xff]
    %v42 = vld [vmem:[#allocation5] sm:$0xff]
    %v44 = vperm.slane %v42, 0
    %v45 = vperm.slane %v42, 1
    %v46 = vperm.slane %v42, 2
    %v47 = vperm.slane %v42, 3
    %v48 = vperm.slane %v42, 4
    %v49 = vperm.slane %v42, 5
    %v50 = vperm.slane %v42, 6
    %v51 = vperm.slane %v42, 7
    %v52 = vrot.slane %v45, 6
    %v53 = vrot.slane %v46, 4
    %v54 = vrot.slane %v47, 2
    %v55 = vrot.slane %v49, 6
    %v56 = vrot.slane %v50, 4
    %v57 = vrot.slane %v51, 2
    %vm58 = vcmask 1041408
    %v59 = vsel %vm58, %v44, %v52
    %vm60 = vcmask 1045508
    %v61 = vsel %vm60, %v53, %v54
    %vm62 = vcmask 1043456
    %v63 = vsel %vm62, %v59, %v61
    %v64 = vsel %vm58, %v48, %v55
    %v65 = vsel %vm60, %v56, %v57
    %v66 = vsel %vm62, %v64, %v65
    %v69 = vadd.f32 %v40, %v63
    %v70 = vadd.f32 %v41, %v66
    %71 = vst [vmem:[#allocation7] sm:$0xff] %v69
    %72 = vst [vmem:[#allocation7 + $0x8] sm:$0xff] %v70
    // Predicated region
    $region18: #{tpu_custom_call.1} parent=1 // pred_check
      _
    $region19: #{tpu_custom_call.1} parent=1 // pred_check_branch
      %74 = sbr.rel (0) target = $region21
    $region20: #{tpu_custom_call.1} parent=1 // pred_region
      %76 = vsyncadd [#allocation4], 0
      %s78 = sshll.u32 [#allocation7], 4
      %s79 = int_to_ptr.vmem [resolvable:$true] %s78
      %s80 = sshll.u32 %s2, 4
      %s81 = int_to_ptr.hbm [resolvable:$true] %s80
      %83 = dma.vmem_to_hbm [thread:$0]  %s79, 256, %s81, [#allocation4]
    $region21: #{tpu_custom_call.1} parent=1 // pred_fallthru
      _
    // Predicated region
    $region22: #{tpu_custom_call.1} parent=1 // pred_check
      _
    $region23: #{tpu_custom_call.1} parent=1 // pred_check_branch
      %85 = sbr.rel (0) target = $region25
    $region24: #{tpu_custom_call.1} parent=1 // pred_region
      %87 = dma.done [#allocation4], 256
    $region25: #{tpu_custom_call.1} parent=1 // pred_fallthru
      _
    %88 = vsyncpa [#allocation3], 1
    %89 = vsyncpa [#allocation6], 1
    %90 = vsyncpa [#allocation4], 1

</llo_original>
